<compile_context>
chip_gen: v7x
topology: tpu7x:2x2x1
jax: 0.10.0
libtpu: 0.0.40
codegen_flags: <defaults>
</compile_context>

<pallas_src>
import functools

import jax
import jax.numpy as jnp
from jax.experimental import pallas as pl
from jax.experimental.pallas import tpu as pltpu


def _dora_kernel(x_ref, w_ref, b_ref, xah_ref, bm_ref, m_ref, o_ref, acc_ref):
    k = pl.program_id(2)

    @pl.when(k == 0)
    def _init():
        acc_ref[...] = jnp.zeros_like(acc_ref)

    # Frozen linear path: native-dtype MXU matmul with f32 accumulation.
    acc_ref[...] += jnp.dot(x_ref[...], w_ref[...],
                            preferred_element_type=jnp.float32)

    @pl.when(k == pl.num_programs(2) - 1)
    def _finalize():
        # LoRA path: xa_hat already carries alpha and the exact row norm
        # (computed once in the wrapper), so the epilogue is a single tiny
        # (tm, r) x (r, tn) MXU pass plus FMA + cast.
        lora = jnp.dot(xah_ref[...], bm_ref[...],
                       preferred_element_type=jnp.float32)
        out = (acc_ref[...]
               + b_ref[...].astype(jnp.float32)
               + m_ref[...].astype(jnp.float32) * lora)
        o_ref[...] = out.astype(o_ref.dtype)


def _vmem_budget_bytes():
    """Scoped-VMEM request, generation aware: ~48 MiB on v7x, ~96 MiB on v5e/v6e."""
    phys = None
    try:
        phys = getattr(pltpu.get_tpu_info(), "vmem_capacity_bytes", None)
    except Exception:
        phys = None
    if not phys:
        phys = 64 * 1024 * 1024  # conservative fallback (v7x-sized)
    return min(int(phys) * 3 // 4, 100 * 1024 * 1024)


def linear_with_dora(x, w, b, a, bm, m, alpha, *, tm=None, tn=None, tk=None,
                     cast_matmul_operands_to_bf16=False):
    """x: (N, d_in); w: (d_in, d_out); b: (1, d_out); a: (d_in, r);
    bm: (r, d_out); m: (1, d_out).  Output dtype follows x.dtype."""
    n_rows, d_in = x.shape
    d_out = w.shape[1]
    r = a.shape[1]
    out_dtype = x.dtype
    auto_tiles = (tm is None) and (tn is None) and (tk is None)

    # --- LoRA prologue in plain JAX (mem-bound, M*K*r flops, negligible vs the
    #     kernel's x/W traffic).  Row norm of the FULL LoRA output via the
    #     rank-space Gram matrix:  ||(alpha*xa) @ B||^2 = diag(xa (B B^T) xa^T).
    x32 = x.astype(jnp.float32)
    a32 = a.astype(jnp.float32)
    bm32 = bm.astype(jnp.float32)
    xa = float(alpha) * jnp.dot(x32, a32)                       # (n_rows, r)
    gram = jnp.dot(bm32, bm32.T)                                # (r, r)
    sq = jnp.maximum(jnp.sum(jnp.dot(xa, gram) * xa, axis=1, keepdims=True), 0.0)
    xa_hat = xa / (jnp.sqrt(sq) + 1e-9)                         # (n_rows, r), f32

    # Optional bf16 cast of the big matmul operands (keeps f32 accumulation).
    if cast_matmul_operands_to_bf16:
        x_mm = x.astype(jnp.bfloat16)
        w_mm = w.astype(jnp.bfloat16)
    else:
        x_mm, w_mm = x, w
    # TODO(synk): on v7x, a weight-only fp8 W (bf16 x, f32 acc) would halve W
    # HBM traffic and ~double MXU rate on the dominant matmul.

    # --- Generation-aware tile sizing against the VMEM budget. ---
    budget = _vmem_budget_bytes()
    itemsize = jnp.dtype(x_mm.dtype).itemsize

    tm_cap, tn_cap, tk_cap = 512, 1024, 1024
    if budget >= 80 * 1024 * 1024:          # 128 MiB-VMEM parts (v5e / v6e)
        tn_cap, tk_cap = 2048, 2048

    def _est(tm_, tn_, tk_):
        main = 2 * (tm_ * tk_ + tk_ * tn_ + tm_ * tn_) * itemsize   # x, W, out (dbl-buf)
        side = 2 * (tm_ * r * 4 + r * tn_ * itemsize + 2 * tn_ * itemsize)
        return main + side + tm_ * tn_ * 4                          # + f32 accumulator

    while _est(tm_cap, tn_cap, tk_cap) > int(budget * 0.85):
        if tk_cap >= tn_cap and tk_cap > 256:
            tk_cap //= 2
        elif tn_cap > 256:
            tn_cap //= 2
        elif tm_cap > 128:
            tm_cap //= 2
        else:
            break

    tm = tm if tm is not None else min(n_rows, tm_cap)
    tn = tn if tn is not None else min(d_out, tn_cap)
    tk = tk if tk is not None else min(d_in, tk_cap)

    # Keep at least 2 "parallel" blocks so v7x's second TensorCore gets work
    # (a grid of (1, 1, K) leaves one core idle; the extra step is ~0.35 us on
    # single-core parts, negligible).
    if auto_tiles and (n_rows // tm) * (d_out // tn) == 1:
        if d_out % 256 == 0:
            tn = d_out // 2
        elif n_rows % 16 == 0:
            tm = n_rows // 2

    assert n_rows % tm == 0 and d_out % tn == 0 and d_in % tk == 0, \
        "shapes must be divisible by tile sizes"  # TODO(synk): pad ragged shapes

    grid = (n_rows // tm, d_out // tn, d_in // tk)

    return pl.pallas_call(
        _dora_kernel,
        out_shape=jax.ShapeDtypeStruct((n_rows, d_out), out_dtype),
        grid_spec=pltpu.PrefetchScalarGridSpec(
            num_scalar_prefetch=0,
            grid=grid,
            in_specs=[
                pl.BlockSpec((tm, tk), lambda i, j, k: (i, k)),   # x
                pl.BlockSpec((tk, tn), lambda i, j, k: (k, j)),   # W
                pl.BlockSpec((1, tn), lambda i, j, k: (0, j)),    # b
                pl.BlockSpec((tm, r), lambda i, j, k: (i, 0)),    # xa_hat (f32)
                pl.BlockSpec((r, tn), lambda i, j, k: (0, j)),    # B
                pl.BlockSpec((1, tn), lambda i, j, k: (0, j)),    # m
            ],
            out_specs=pl.BlockSpec((tm, tn), lambda i, j, k: (i, j)),
            scratch_shapes=[
                pltpu.VMEM((tm, tn), jnp.float32),   # linear-path accumulator
            ],
        ),
        compiler_params=pltpu.CompilerParams(
            dimension_semantics=("parallel", "parallel", "arbitrary"),
            vmem_limit_bytes=budget,
        ),
        # TODO(synk): for long-K, small-batch cases on v5e (W-stream bound), add
        # pipeline_mode=pl.Buffered(3) on the W BlockSpec (re-check VMEM budget).
    )(x_mm, w_mm, b, xa_hat, bm, m)


def reference(x, w, b, a, bm, m, alpha):
    x, w, b, a, bm, m = (t.astype(jnp.float32) for t in (x, w, b, a, bm, m))
    linear_out = x @ w + b
    lora_out = alpha * (x @ a @ bm)
    norm = jnp.linalg.norm(lora_out, axis=1, keepdims=True)
    return linear_out + m * (lora_out / (norm + 1e-9))


if __name__ == "__main__":
    # Small-but-tileable shapes consistent with the module.
    batch, d_in, d_out, rank = 16, 256, 384, 8
    alpha = 2.0

    key = jax.random.PRNGKey(0)
    kx, kw, kb, ka, kbm = jax.random.split(key, 5)

    x = jax.random.normal(kx, (batch, d_in), dtype=jnp.float32)
    w = jax.random.normal(kw, (d_in, d_out), dtype=jnp.float32) * 0.1   # (in, out)
    b = jax.random.normal(kb, (1, d_out), dtype=jnp.float32) * 0.1
    # LoRA: A ~ U[0,1)/sqrt(rank); B would be zeros at init -- use small random
    # values here so the normalization path is actually exercised.
    a = jax.random.uniform(ka, (d_in, rank), dtype=jnp.float32) / jnp.sqrt(rank)
    bm = jax.random.normal(kbm, (rank, d_out), dtype=jnp.float32) * 0.05
    m = jnp.ones((1, d_out), dtype=jnp.float32)

    # --- f32 run with explicit small tiles: exercises K accumulation and
    #     N tiling with the wrapper-hoisted row norm (grid = (1, 3, 2)). ---
    out = linear_with_dora(x, w, b, a, bm, m, alpha, tm=16, tn=128, tk=128)
    out = jax.block_until_ready(out)
    ref = reference(x, w, b, a, bm, m, alpha)
    assert out.shape == (batch, d_out) and out.dtype == jnp.float32
    assert jnp.allclose(out, ref, atol=2e-3, rtol=2e-3), "f32 mismatch vs reference"

    # --- bf16 run with auto (generation-aware) tiles: native bf16 MXU path,
    #     bf16 output; small shapes trigger the 2-parallel-block split. ---
    xb, wb, bb, ab, bmb, mb = (t.astype(jnp.bfloat16) for t in (x, w, b, a, bm, m))
    out_bf16 = linear_with_dora(xb, wb, bb, ab, bmb, mb, alpha)
    out_bf16 = jax.block_until_ready(out_bf16)
    ref_bf16 = reference(xb, wb, bb, ab, bmb, mb, alpha)
    assert out_bf16.dtype == jnp.bfloat16
    assert jnp.allclose(out_bf16.astype(jnp.float32), ref_bf16,
                        atol=5e-2, rtol=5e-2), "bf16 mismatch vs reference"

    print("KERNEL_OK")
</pallas_src>

<mosaic_0001>
module attributes {stable_mosaic.version = 11 : i64} {
  func.func @_dora_kernel(%arg0: i32, %arg1: i32, %arg2: i32, %arg3: memref<16x128xf32, #tpu.memory_space<vmem>>, %arg4: memref<128x128xf32, #tpu.memory_space<vmem>>, %arg5: memref<1x128xf32, #tpu.memory_space<vmem>>, %arg6: memref<16x8xf32, #tpu.memory_space<vmem>>, %arg7: memref<8x128xf32, #tpu.memory_space<vmem>>, %arg8: memref<1x128xf32, #tpu.memory_space<vmem>>, %arg9: memref<16x128xf32, #tpu.memory_space<vmem>>, %arg10: memref<16x128xf32, #tpu.memory_space<vmem>>) attributes {dimension_semantics = [#tpu.dimension_semantics<parallel>, #tpu.dimension_semantics<parallel>, #tpu.dimension_semantics<arbitrary>], iteration_bounds = array<i64: 1, 3, 2>, scalar_prefetch = 0 : i64, scratch_operands = 1 : i64, tpu.core_type = #tpu.core_type<tc>, window_params = [{transform_indices = @transform_0, window_bounds = array<i64: 16, 128>}, {transform_indices = @transform_1, window_bounds = array<i64: 128, 128>}, {transform_indices = @transform_2, window_bounds = array<i64: 1, 128>}, {transform_indices = @transform_3, window_bounds = array<i64: 16, 8>}, {transform_indices = @transform_4, window_bounds = array<i64: 8, 128>}, {transform_indices = @transform_5, window_bounds = array<i64: 1, 128>}, {transform_indices = @transform_6, window_bounds = array<i64: 16, 128>}]} {
    %c0_i32 = arith.constant 0 : i32
    %0 = arith.cmpi eq, %arg2, %c0_i32 : i32
    %1 = arith.extui %0 : i1 to i32
    %c0_i32_0 = arith.constant 0 : i32
    %2 = arith.cmpi ne, %1, %c0_i32_0 : i32
    scf.if %2 {
      %cst_9 = arith.constant 0.000000e+00 : f32
      %12 = vector.broadcast %cst_9 : f32 to vector<16x128xf32>
      %c0_10 = arith.constant 0 : index
      %c0_11 = arith.constant 0 : index
      %13 = vector.load %arg10[%c0_10, %c0_11] : memref<16x128xf32, #tpu.memory_space<vmem>>, vector<16x128xf32>
      tpu.vector_store %arg10[%c0_10, %c0_11], %12 {strides = array<i32>} : memref<16x128xf32, #tpu.memory_space<vmem>>, vector<16x128xf32>,
    } else {
    }
    %c0 = arith.constant 0 : index
    %c0_1 = arith.constant 0 : index
    %3 = vector.load %arg10[%c0, %c0_1] : memref<16x128xf32, #tpu.memory_space<vmem>>, vector<16x128xf32>
    %c0_2 = arith.constant 0 : index
    %c0_3 = arith.constant 0 : index
    %4 = vector.load %arg3[%c0_2, %c0_3] : memref<16x128xf32, #tpu.memory_space<vmem>>, vector<16x128xf32>
    %c0_4 = arith.constant 0 : index
    %c0_5 = arith.constant 0 : index
    %5 = vector.load %arg4[%c0_4, %c0_5] : memref<128x128xf32, #tpu.memory_space<vmem>>, vector<128x128xf32>
    %cst = arith.constant dense<0.000000e+00> : vector<16x128xf32>
    %6 = tpu.matmul %4, %5, %cst {dimension_numbers = #tpu.dot_dimension_numbers<[1], [0], [0], [1], [0, 0, 1, 1], [], []>} : vector<16x128xf32>, vector<128x128xf32>, vector<16x128xf32> -> vector<16x128xf32>
    %7 = arith.addf %3, %6 : vector<16x128xf32>
    %c0_6 = arith.constant 0 : index
    %c0_7 = arith.constant 0 : index
    %8 = vector.load %arg10[%c0_6, %c0_7] : memref<16x128xf32, #tpu.memory_space<vmem>>, vector<16x128xf32>
    tpu.vector_store %arg10[%c0_6, %c0_7], %7 {strides = array<i32>} : memref<16x128xf32, #tpu.memory_space<vmem>>, vector<16x128xf32>,
    %c1_i32 = arith.constant 1 : i32
    %9 = arith.cmpi eq, %arg2, %c1_i32 : i32
    %10 = arith.extui %9 : i1 to i32
    %c0_i32_8 = arith.constant 0 : i32
    %11 = arith.cmpi ne, %10, %c0_i32_8 : i32
    scf.if %11 {
      %c0_9 = arith.constant 0 : index
      %c0_10 = arith.constant 0 : index
      %12 = vector.load %arg6[%c0_9, %c0_10] : memref<16x8xf32, #tpu.memory_space<vmem>>, vector<16x8xf32>
      %c0_11 = arith.constant 0 : index
      %c0_12 = arith.constant 0 : index
      %13 = vector.load %arg7[%c0_11, %c0_12] : memref<8x128xf32, #tpu.memory_space<vmem>>, vector<8x128xf32>
      %cst_13 = arith.constant dense<0.000000e+00> : vector<16x128xf32>
      %14 = tpu.matmul %12, %13, %cst_13 {dimension_numbers = #tpu.dot_dimension_numbers<[1], [0], [0], [1], [0, 0, 1, 1], [], []>} : vector<16x8xf32>, vector<8x128xf32>, vector<16x128xf32> -> vector<16x128xf32>
      %c0_14 = arith.constant 0 : index
      %c0_15 = arith.constant 0 : index
      %15 = vector.load %arg10[%c0_14, %c0_15] : memref<16x128xf32, #tpu.memory_space<vmem>>, vector<16x128xf32>
      %c0_16 = arith.constant 0 : index
      %c0_17 = arith.constant 0 : index
      %16 = vector.load %arg5[%c0_16, %c0_17] : memref<1x128xf32, #tpu.memory_space<vmem>>, vector<1x128xf32>
      %17 = vector.broadcast %16 : vector<1x128xf32> to vector<16x128xf32>
      %18 = arith.addf %15, %17 : vector<16x128xf32>
      %c0_18 = arith.constant 0 : index
      %c0_19 = arith.constant 0 : index
      %19 = vector.load %arg8[%c0_18, %c0_19] : memref<1x128xf32, #tpu.memory_space<vmem>>, vector<1x128xf32>
      %20 = vector.broadcast %19 : vector<1x128xf32> to vector<16x128xf32>
      %21 = arith.mulf %20, %14 : vector<16x128xf32>
      %22 = arith.addf %18, %21 : vector<16x128xf32>
      %c0_20 = arith.constant 0 : index
      %c0_21 = arith.constant 0 : index
      %23 = vector.load %arg9[%c0_20, %c0_21] : memref<16x128xf32, #tpu.memory_space<vmem>>, vector<16x128xf32>
      tpu.vector_store %arg9[%c0_20, %c0_21], %22 {strides = array<i32>} : memref<16x128xf32, #tpu.memory_space<vmem>>, vector<16x128xf32>,
    } else {
    }
    return
  }
  func.func @transform_0(%arg0: i32, %arg1: i32, %arg2: i32) -> (i32, i32) {
    %c0_i32 = arith.constant 0 : i32
    return %arg0, %arg2 : i32, i32
  }
  func.func @transform_1(%arg0: i32, %arg1: i32, %arg2: i32) -> (i32, i32) {
    %c0_i32 = arith.constant 0 : i32
    return %arg2, %arg1 : i32, i32
  }
  func.func @transform_2(%arg0: i32, %arg1: i32, %arg2: i32) -> (i32, i32) {
    %c0_i32 = arith.constant 0 : i32
    %c0_i32_0 = arith.constant 0 : i32
    return %c0_i32, %arg1 : i32, i32
  }
  func.func @transform_3(%arg0: i32, %arg1: i32, %arg2: i32) -> (i32, i32) {
    %c0_i32 = arith.constant 0 : i32
    %c0_i32_0 = arith.constant 0 : i32
    return %arg0, %c0_i32 : i32, i32
  }
  func.func @transform_4(%arg0: i32, %arg1: i32, %arg2: i32) -> (i32, i32) {
    %c0_i32 = arith.constant 0 : i32
    %c0_i32_0 = arith.constant 0 : i32
    return %c0_i32, %arg1 : i32, i32
  }
  func.func @transform_5(%arg0: i32, %arg1: i32, %arg2: i32) -> (i32, i32) {
    %c0_i32 = arith.constant 0 : i32
    %c0_i32_0 = arith.constant 0 : i32
    return %c0_i32, %arg1 : i32, i32
  }
  func.func @transform_6(%arg0: i32, %arg1: i32, %arg2: i32) -> (i32, i32) {
    %c0_i32 = arith.constant 0 : i32
    return %arg0, %arg1 : i32, i32
  }
}

</mosaic_0001>

<llo_original>
// kernel: tpu_custom_call.1
$region0: #{tpu_custom_call.1}
  #allocation0 [shape = 'u32[]', space=smem, size = 0x4, offset = 0x4, fixed_abs, tag = 'smem constant byte address 0x4 - core index']
  #allocation1 [shape = 'u32[144,128]{1,0:T(1,128)}', space=vmem, size = 0x12000, scoped, tag = 'internal scratch']
  #allocation2 [shape = 'f32[16,128]{1,0:T(8,128)}', space=vmem, size = 0x2000, scoped, tag = 'scratch operand']
  %s0 = inlined_call_operand.hbm [shape: f32[16,256], index: 0, kind: input, shape index: {}]
  %s1 = inlined_call_operand.hbm [shape: f32[256,384], index: 1, kind: input, shape index: {}]
  %s2 = inlined_call_operand.vmem [shape: f32[1,384], index: 2, kind: input, shape index: {}]
  %s3 = inlined_call_operand.vmem [shape: f32[16,8], index: 3, kind: input, shape index: {}]
  %s4 = inlined_call_operand.vmem [shape: f32[8,384], index: 4, kind: input, shape index: {}]
  %s5 = inlined_call_operand.vmem [shape: f32[1,384], index: 5, kind: input, shape index: {}]
  %s6 = inlined_call_operand.hbm [shape: f32[16,384], index: 6, kind: output, shape index: {}]
  %s7 = sld [smem:[#allocation0]]
  $region73: #{tpu_custom_call.1} parent=0
    _
  %s9 = ssub.s32 1, %s7
  %s10 = scalar_select 0, %s9, %s7
  $region1: #{tpu_custom_call.1} parent=0
    #allocation3 [shape = 'u8[16384]{0}', space=vmem, size = 0x4000, scoped, tag = 'input window, operand 0']
    #allocation4 [shape = 's32[2]{0}', space=sflag, size = 0x8, scoped, tag = 'scoped memory for tpu_custom_call.1']
    #allocation5 [shape = 's32[2]{0}', space=sflag, size = 0x8, scoped, tag = 'scoped memory for tpu_custom_call.1']
    #allocation6 [shape = 'u8[131072]{0}', space=vmem, size = 0x20000, scoped, tag = 'input window, operand 1']
    #allocation7 [shape = 's32[2]{0}', space=sflag, size = 0x8, scoped, tag = 'scoped memory for tpu_custom_call.1']
    #allocation8 [shape = 'u8[16384]{0}', space=vmem, size = 0x4000, scoped, tag = 'output window, operand 0']
    %11 = vsyncpa [#allocation4], 0
    %s12 = scalar_lea.sflag [#allocation4], 1
    %13 = vsyncpa %s12, 0
    %14 = vsyncpa [#allocation7], 0
    %s15 = scalar_lea.sflag [#allocation7], 1
    %16 = vsyncpa %s15, 0
    %17 = vsyncpa [#allocation5], 0
    %s18 = scalar_lea.sflag [#allocation5], 1
    %19 = vsyncpa %s18, 0
    loop: start=0, step=1, limit=8
    $region2: #{tpu_custom_call.1} parent=1 // loop_pre_header
      _
    $region3: #{tpu_custom_call.1} parent=1 // loop_header
      %s21 = sphi 0, %s25
      %p22 = scmp.ge.s32.totalorder %s21, 8
      %s28 = sphi 0, %s47
      %s29 = sphi 0, %s43
      %s30 = sphi 0, %s39
      %s31 = sphi 0, %s28
      %s32 = sphi 0, %s29
      %s33 = sphi 0, %s30
      %s34 = sphi 0, %s31
      %s35 = sphi 0, %s32
      %s36 = sphi 0, %s33
      %s52 = sphi 0, %s54
      %s55 = sphi 0, %s52
      %s56 = sphi 0, %s55
      %s72 = sphi 0, %s56
      %s80 = sphi 0, %s82
      %s83 = sphi 0, %s80
      %s84 = sphi 0, %s83
      %s100 = sphi 0, %s84
      %s106 = sphi 0, %s108
      %s109 = sphi 0, %s106
      %s110 = sphi 0, %s109
      %s126 = sphi 0, %s110
      %s132 = sphi 0, %s134
      %s135 = sphi 0, %s132
      %s136 = sphi 0, %s135
      %s152 = sphi 0, %s136
      %s158 = sphi 0, %s160
      %s161 = sphi 0, %s158
      %s162 = sphi 0, %s161
      %s178 = sphi 0, %s162
      %s184 = sphi 0, %s186
      %s187 = sphi 0, %s184
      %s188 = sphi 0, %s187
      %s204 = sphi 0, %s188
      %s212 = sphi 0, %s214
      %s215 = sphi 0, %s212
      %s216 = sphi 0, %s215
      %s232 = sphi 0, %s216
    $region4: #{tpu_custom_call.1} parent=1 // loop_header_branch
      %24 = sbr.rel (%p22) target = $region8
    $region5: #{tpu_custom_call.1} parent=1 // loop_body
      %s26 = ssub.s32 %s21, 1
      %s27 = ssub.s32 %s21, 2
      %s37 = sadd.s32 1, %s30
      %p38 = scmp.ge.s32.totalorder %s37, 2
      %s39 = scalar_select %p38, 0, %s37
      %s40 = sadd.s32 1, %s29
      %s41 = scalar_select %p38, %s40, %s29
      %p42 = scmp.ge.s32.totalorder %s41, 3
      %s43 = scalar_select %p42, 0, %s41
      %s44 = sadd.s32 1, %s28
      %s45 = scalar_select %p42, %s44, %s28
      %p46 = scmp.ge.s32.totalorder %s45, 1
      %s47 = scalar_select %p46, 0, %s45
      %s48 = ssub.s32 %s28, %s47
      %s49 = ssub.s32 %s30, %s39
      %s50 = sor.u32 %s48, %s49
      %p51 = scmp.eq.s32.totalorder %s50, 0
      %s53 = sadd.s32 %s52, 1
      %s54 = scalar_select %p51, %s52, %s53
      %p57 = pneg %p51
      %p58 = scmp.eq.s32.totalorder %s21, 5
      %p59 = por %p57, %p58
      %p60 = scmp.ne.s32.totalorder %s52, %s55
      %p61 = scmp.eq.s32.totalorder %s21, 0
      %p62 = por %p60, %p61
      %p63 = scmp.ne.s32.totalorder %s52, %s55
      %p64 = scmp.eq.s32.totalorder %s26, 5
      %p65 = por %p63, %p64
      %p66 = scmp.ne.s32.totalorder %s55, %s56
      %p67 = scmp.eq.s32.totalorder %s26, 0
      %p68 = por %p66, %p67
      %p69 = scmp.ne.s32.totalorder %s55, %s56
      %p70 = scmp.eq.s32.totalorder %s27, 5
      %p71 = por %p69, %p70
      %p73 = scmp.ne.s32.totalorder %s56, %s72
      %p74 = scmp.eq.s32.totalorder %s27, 0
      %p75 = por %p73, %p74
      %s76 = ssub.s32 %s30, %s39
      %s77 = ssub.s32 %s29, %s43
      %s78 = sor.u32 %s76, %s77
      %p79 = scmp.eq.s32.totalorder %s78, 0
      %s81 = sadd.s32 %s80, 1
      %s82 = scalar_select %p79, %s80, %s81
      %p85 = pneg %p79
      %p86 = scmp.eq.s32.totalorder %s21, 5
      %p87 = por %p85, %p86
      %p88 = scmp.ne.s32.totalorder %s80, %s83
      %p89 = scmp.eq.s32.totalorder %s21, 0
      %p90 = por %p88, %p89
      %p91 = scmp.ne.s32.totalorder %s80, %s83
      %p92 = scmp.eq.s32.totalorder %s26, 5
      %p93 = por %p91, %p92
      %p94 = scmp.ne.s32.totalorder %s83, %s84
      %p95 = scmp.eq.s32.totalorder %s26, 0
      %p96 = por %p94, %p95
      %p97 = scmp.ne.s32.totalorder %s83, %s84
      %p98 = scmp.eq.s32.totalorder %s27, 5
      %p99 = por %p97, %p98
      %p101 = scmp.ne.s32.totalorder %s84, %s100
      %p102 = scmp.eq.s32.totalorder %s27, 0
      %p103 = por %p101, %p102
      %s104 = ssub.s32 %s29, %s43
      %p105 = scmp.eq.s32.totalorder %s104, 0
      %s107 = sadd.s32 %s106, 1
      %s108 = scalar_select %p105, %s106, %s107
      %p111 = pneg %p105
      %p112 = scmp.eq.s32.totalorder %s21, 5
      %p113 = por %p111, %p112
      %p114 = scmp.ne.s32.totalorder %s106, %s109
      %p115 = scmp.eq.s32.totalorder %s21, 0
      %p116 = por %p114, %p115
      %p117 = scmp.ne.s32.totalorder %s106, %s109
      %p118 = scmp.eq.s32.totalorder %s26, 5
      %p119 = por %p117, %p118
      %p120 = scmp.ne.s32.totalorder %s109, %s110
      %p121 = scmp.eq.s32.totalorder %s26, 0
      %p122 = por %p120, %p121
      %p123 = scmp.ne.s32.totalorder %s109, %s110
      %p124 = scmp.eq.s32.totalorder %s27, 5
      %p125 = por %p123, %p124
      %p127 = scmp.ne.s32.totalorder %s110, %s126
      %p128 = scmp.eq.s32.totalorder %s27, 0
      %p129 = por %p127, %p128
      %s130 = ssub.s32 %s28, %s47
      %p131 = scmp.eq.s32.totalorder %s130, 0
      %s133 = sadd.s32 %s132, 1
      %s134 = scalar_select %p131, %s132, %s133
      %p137 = pneg %p131
      %p138 = scmp.eq.s32.totalorder %s21, 5
      %p139 = por %p137, %p138
      %p140 = scmp.ne.s32.totalorder %s132, %s135
      %p141 = scmp.eq.s32.totalorder %s21, 0
      %p142 = por %p140, %p141
      %p143 = scmp.ne.s32.totalorder %s132, %s135
      %p144 = scmp.eq.s32.totalorder %s26, 5
      %p145 = por %p143, %p144
      %p146 = scmp.ne.s32.totalorder %s135, %s136
      %p147 = scmp.eq.s32.totalorder %s26, 0
      %p148 = por %p146, %p147
      %p149 = scmp.ne.s32.totalorder %s135, %s136
      %p150 = scmp.eq.s32.totalorder %s27, 5
      %p151 = por %p149, %p150
      %p153 = scmp.ne.s32.totalorder %s136, %s152
      %p154 = scmp.eq.s32.totalorder %s27, 0
      %p155 = por %p153, %p154
      %s156 = ssub.s32 %s29, %s43
      %p157 = scmp.eq.s32.totalorder %s156, 0
      %s159 = sadd.s32 %s158, 1
      %s160 = scalar_select %p157, %s158, %s159
      %p163 = pneg %p157
      %p164 = scmp.eq.s32.totalorder %s21, 5
      %p165 = por %p163, %p164
      %p166 = scmp.ne.s32.totalorder %s158, %s161
      %p167 = scmp.eq.s32.totalorder %s21, 0
      %p168 = por %p166, %p167
      %p169 = scmp.ne.s32.totalorder %s158, %s161
      %p170 = scmp.eq.s32.totalorder %s26, 5
      %p171 = por %p169, %p170
      %p172 = scmp.ne.s32.totalorder %s161, %s162
      %p173 = scmp.eq.s32.totalorder %s26, 0
      %p174 = por %p172, %p173
      %p175 = scmp.ne.s32.totalorder %s161, %s162
      %p176 = scmp.eq.s32.totalorder %s27, 5
      %p177 = por %p175, %p176
      %p179 = scmp.ne.s32.totalorder %s162, %s178
      %p180 = scmp.eq.s32.totalorder %s27, 0
      %p181 = por %p179, %p180
      %s182 = ssub.s32 %s29, %s43
      %p183 = scmp.eq.s32.totalorder %s182, 0
      %s185 = sadd.s32 %s184, 1
      %s186 = scalar_select %p183, %s184, %s185
      %p189 = pneg %p183
      %p190 = scmp.eq.s32.totalorder %s21, 5
      %p191 = por %p189, %p190
      %p192 = scmp.ne.s32.totalorder %s184, %s187
      %p193 = scmp.eq.s32.totalorder %s21, 0
      %p194 = por %p192, %p193
      %p195 = scmp.ne.s32.totalorder %s184, %s187
      %p196 = scmp.eq.s32.totalorder %s26, 5
      %p197 = por %p195, %p196
      %p198 = scmp.ne.s32.totalorder %s187, %s188
      %p199 = scmp.eq.s32.totalorder %s26, 0
      %p200 = por %p198, %p199
      %p201 = scmp.ne.s32.totalorder %s187, %s188
      %p202 = scmp.eq.s32.totalorder %s27, 5
      %p203 = por %p201, %p202
      %p205 = scmp.ne.s32.totalorder %s188, %s204
      %p206 = scmp.eq.s32.totalorder %s27, 0
      %p207 = por %p205, %p206
      %s208 = ssub.s32 %s28, %s47
      %s209 = ssub.s32 %s29, %s43
      %s210 = sor.u32 %s208, %s209
      %p211 = scmp.eq.s32.totalorder %s210, 0
      %s213 = sadd.s32 %s212, 1
      %s214 = scalar_select %p211, %s212, %s213
      %p217 = pneg %p211
      %p218 = scmp.eq.s32.totalorder %s21, 5
      %p219 = por %p217, %p218
      %p220 = scmp.ne.s32.totalorder %s212, %s215
      %p221 = scmp.eq.s32.totalorder %s21, 0
      %p222 = por %p220, %p221
      %p223 = scmp.ne.s32.totalorder %s212, %s215
      %p224 = scmp.eq.s32.totalorder %s26, 5
      %p225 = por %p223, %p224
      %p226 = scmp.ne.s32.totalorder %s215, %s216
      %p227 = scmp.eq.s32.totalorder %s26, 0
      %p228 = por %p226, %p227
      %p229 = scmp.ne.s32.totalorder %s215, %s216
      %p230 = scmp.eq.s32.totalorder %s27, 5
      %p231 = por %p229, %p230
      %p233 = scmp.ne.s32.totalorder %s216, %s232
      %p234 = scmp.eq.s32.totalorder %s27, 0
      %p235 = por %p233, %p234
      %p236 = scmp.le.s32.totalorder 1, %s21
      %p237 = scmp.lt.s32.totalorder %s21, 7
      %p238 = pnand %p236, %p237
      %p239 = pneg %p238
      // Predicated region
      $region9: #{tpu_custom_call.1} parent=5 // pred_check
        _
      $region10: #{tpu_custom_call.1} parent=5 // pred_check_branch
        %241 = sbr.rel (%p238) target = $region12
      $region11: #{tpu_custom_call.1} parent=5 // pred_region
        %s242 = ssub.s32 %s21, 1
        // Predicated region
        $region13: #{tpu_custom_call.1} parent=11 // pred_check
          %p243 = pneg %p148
        $region14: #{tpu_custom_call.1} parent=11 // pred_check_branch
          %245 = sbr.rel (%p243) target = $region16
        $region15: #{tpu_custom_call.1} parent=11 // pred_region
          %s246 = smul.u32 2, %s31
          %p247 = scmp.lt.s32.totalorder %s246, 1
          %s248 = scalar_select %p247, %s246, 1
          %s249 = smul.addr %s248, 8
          %s250 = scalar_lea.vmem %s3, %s249
          %s251 = smul.u32 2, %s31
        $region16: #{tpu_custom_call.1} parent=11 // pred_fallthru
          _
      $region12: #{tpu_custom_call.1} parent=5 // pred_fallthru
        _
      %p252 = scmp.lt.s32.totalorder %s21, 6
      // Predicated region
      $region17: #{tpu_custom_call.1} parent=5 // pred_check
        %p253 = pneg %p252
      $region18: #{tpu_custom_call.1} parent=5 // pred_check_branch
        %255 = sbr.rel (%p253) target = $region20
      $region19: #{tpu_custom_call.1} parent=5 // pred_region
        // Predicated region
        $region21: #{tpu_custom_call.1} parent=19 // pred_check
          %p256 = pneg %p62
        $region22: #{tpu_custom_call.1} parent=19 // pred_check_branch
          %258 = sbr.rel (%p256) target = $region24
        $region23: #{tpu_custom_call.1} parent=19 // pred_region
          %s259 = sand.u32 %s52, 1
          %s260 = scalar_lea.sflag [#allocation4], %s259
          %s261 = sand.u32 %s52, 1
          %s262 = smul.addr %s261, 16
          %s263 = scalar_lea.vmem [#allocation3], %s262
          %s264 = smul.u32 2, %s28
          %s266 = ssub.s32 256, 256
          %267 = vsyncadd %s260, %s266
          %s268 = smul.addr %s264, 2
          %s269 = sadd.s32 %s30, %s268
          %s270 = smul.addr %s269, 128
          %s271 = scalar_lea.hbm %s0, %s270
          %s272 = sshll.u32 %s263, 4
          %s273 = int_to_ptr.vmem [resolvable:$true] %s272
          %278 = dma.hbm_to_vmem [thread:$0]  %s271, 256, %s273, %s260, 256, 128, 8
        $region24: #{tpu_custom_call.1} parent=19 // pred_fallthru
          _
        // Predicated region
        $region25: #{tpu_custom_call.1} parent=19 // pred_check
          %p279 = pneg %p90
        $region26: #{tpu_custom_call.1} parent=19 // pred_check_branch
          %281 = sbr.rel (%p279) target = $region28
        $region27: #{tpu_custom_call.1} parent=19 // pred_region
          %s282 = sand.u32 %s80, 1
          %s283 = scalar_lea.sflag [#allocation7], %s282
          %s284 = sand.u32 %s80, 1
          %s285 = smul.addr %s284, 128
          %s286 = scalar_lea.vmem [#allocation6], %s285
          %s287 = smul.u32 16, %s30
          %s289 = ssub.s32 2048, 2048
          %290 = vsyncadd %s283, %s289
          %s291 = smul.addr %s287, 3
          %s292 = sadd.s32 %s29, %s291
          %s293 = smul.addr %s292, 128
          %s294 = scalar_lea.hbm %s1, %s293
          %s295 = sshll.u32 %s286, 4
          %s296 = int_to_ptr.vmem [resolvable:$true] %s295
          %301 = dma.hbm_to_vmem [thread:$0]  %s294, 2048, %s296, %s283, 384, 128, 8
        $region28: #{tpu_custom_call.1} parent=19 // pred_fallthru
          _
        // Predicated region
        $region29: #{tpu_custom_call.1} parent=19 // pred_check
          %p302 = pneg %p116
        $region30: #{tpu_custom_call.1} parent=19 // pred_check_branch
          %304 = sbr.rel (%p302) target = $region32
        $region31: #{tpu_custom_call.1} parent=19 // pred_region
          %p305 = scmp.lt.s32.totalorder %s29, 2
          %s306 = scalar_select %p305, %s29, 2
          %s307 = scalar_lea.vmem %s2, %s306
        $region32: #{tpu_custom_call.1} parent=19 // pred_fallthru
          _
        // Predicated region
        $region33: #{tpu_custom_call.1} parent=19 // pred_check
          %p308 = pneg %p168
        $region34: #{tpu_custom_call.1} parent=19 // pred_check_branch
          %310 = sbr.rel (%p308) target = $region36
        $region35: #{tpu_custom_call.1} parent=19 // pred_region
          %p311 = scmp.lt.s32.totalorder %s29, 2
          %s312 = scalar_select %p311, %s29, 2
          %s313 = smul.addr %s312, 8
          %s314 = scalar_lea.vmem %s4, %s313
        $region36: #{tpu_custom_call.1} parent=19 // pred_fallthru
          _
        // Predicated region
        $region37: #{tpu_custom_call.1} parent=19 // pred_check
          %p315 = pneg %p194
        $region38: #{tpu_custom_call.1} parent=19 // pred_check_branch
          %317 = sbr.rel (%p315) target = $region40
        $region39: #{tpu_custom_call.1} parent=19 // pred_region
          %p318 = scmp.lt.s32.totalorder %s29, 2
          %s319 = scalar_select %p318, %s29, 2
          %s320 = scalar_lea.vmem %s5, %s319
        $region40: #{tpu_custom_call.1} parent=19 // pred_fallthru
          _
      $region20: #{tpu_custom_call.1} parent=5 // pred_fallthru
        _
      %p321 = scmp.le.s32.totalorder 1, %s21
      %p322 = scmp.lt.s32.totalorder %s21, 7
      %p323 = pnand %p321, %p322
      %p324 = pneg %p323
      // Predicated region
      $region41: #{tpu_custom_call.1} parent=5 // pred_check
        _
      $region42: #{tpu_custom_call.1} parent=5 // pred_check_branch
        %326 = sbr.rel (%p323) target = $region44
      $region43: #{tpu_custom_call.1} parent=5 // pred_region
        %s327 = ssub.s32 %s21, 1
        %s328 = sand.u32 %s55, 1
        %s329 = scalar_lea.sflag [#allocation4], %s328
        %s330 = sand.u32 %s55, 1
        %s331 = smul.addr %s330, 16
        %s332 = scalar_lea.vmem [#allocation3], %s331
        // Predicated region
        $region45: #{tpu_custom_call.1} parent=43 // pred_check
          %p333 = pneg %p68
        $region46: #{tpu_custom_call.1} parent=43 // pred_check_branch
          %335 = sbr.rel (%p333) target = $region48
        $region47: #{tpu_custom_call.1} parent=43 // pred_region
          %336 = dma.done %s329, 256
        $region48: #{tpu_custom_call.1} parent=43 // pred_fallthru
          _
        %s337 = sand.u32 %s83, 1
        %s338 = scalar_lea.sflag [#allocation7], %s337
        %s339 = sand.u32 %s83, 1
        %s340 = smul.addr %s339, 128
        %s341 = scalar_lea.vmem [#allocation6], %s340
        // Predicated region
        $region49: #{tpu_custom_call.1} parent=43 // pred_check
          %p342 = pneg %p96
        $region50: #{tpu_custom_call.1} parent=43 // pred_check_branch
          %344 = sbr.rel (%p342) target = $region52
        $region51: #{tpu_custom_call.1} parent=43 // pred_region
          %345 = dma.done %s338, 2048
        $region52: #{tpu_custom_call.1} parent=43 // pred_fallthru
          _
        %s346 = sand.u32 %s55, 1
        %s347 = scalar_lea.sflag [#allocation4], %s346
        %s348 = sand.u32 %s55, 1
        %s349 = smul.addr %s348, 16
        %s350 = scalar_lea.vmem [#allocation3], %s349
        %p351 = pneg %p68
        %p352 = pneg %p65
        %s353 = sand.u32 %s83, 1
        %s354 = scalar_lea.sflag [#allocation7], %s353
        %s355 = sand.u32 %s83, 1
        %s356 = smul.addr %s355, 128
        %s357 = scalar_lea.vmem [#allocation6], %s356
        %p358 = pneg %p96
        %p359 = pneg %p93
        %p360 = scmp.lt.s32.totalorder %s32, 2
        %s361 = scalar_select %p360, %s32, 2
        %s362 = scalar_lea.vmem %s2, %s361
        %p363 = pneg %p122
        %p364 = pneg %p119
        %s365 = smul.u32 2, %s31
        %p366 = scmp.lt.s32.totalorder %s365, 1
        %s367 = scalar_select %p366, %s365, 1
        %s368 = smul.addr %s367, 8
        %s369 = scalar_lea.vmem %s3, %s368
        %p370 = pneg %p148
        %p371 = pneg %p145
        %p372 = scmp.lt.s32.totalorder %s32, 2
        %s373 = scalar_select %p372, %s32, 2
        %s374 = smul.addr %s373, 8
        %s375 = scalar_lea.vmem %s4, %s374
        %p376 = pneg %p174
        %p377 = pneg %p171
        %p378 = scmp.lt.s32.totalorder %s32, 2
        %s379 = scalar_select %p378, %s32, 2
        %s380 = scalar_lea.vmem %s5, %s379
        %p381 = pneg %p200
        %p382 = pneg %p197
        %p383 = pneg %p228
        %p384 = pneg %p225
        %s385 = sand.u32 %s215, 1
        %s386 = scalar_lea.sflag [#allocation5], %s385
        %s387 = sand.u32 %s215, 1
        %s388 = smul.addr %s387, 16
        %s389 = scalar_lea.vmem [#allocation8], %s388
        %s390 = smul.u32 2, %s31
        %s391 = smul.u32 16, %s33
        %p392 = scmp.lt.s32.totalorder %s32, 2
        %s393 = scalar_select %p392, %s32, 2
        %s394 = scalar_lea.vmem %s2, %s393
        %s395 = smul.u32 2, %s31
        %p396 = scmp.lt.s32.totalorder %s395, 1
        %s397 = scalar_select %p396, %s395, 1
        %s398 = smul.addr %s397, 8
        %s399 = scalar_lea.vmem %s3, %s398
        %s400 = smul.u32 2, %s31
        %p401 = scmp.lt.s32.totalorder %s32, 2
        %s402 = scalar_select %p401, %s32, 2
        %s403 = smul.addr %s402, 8
        %s404 = scalar_lea.vmem %s4, %s403
        %p405 = scmp.lt.s32.totalorder %s32, 2
        %s406 = scalar_select %p405, %s32, 2
        %s407 = scalar_lea.vmem %s5, %s406
        %s408 = smul.u32 2, %s31
        %p409 = scmp.eq.s32.totalorder %s33, 0
        // Predicated region
        $region53: #{tpu_custom_call.1} parent=43 // pred_check
          %p410 = pneg %p409
        $region54: #{tpu_custom_call.1} parent=43 // pred_check_branch
          %412 = sbr.rel (%p410) target = $region56
        $region55: #{tpu_custom_call.1} parent=43 // pred_region
          %413 = vst [vmem:[#allocation2] sm:$0xff] 0.0
          %414 = vst [vmem:[#allocation2 + $0x8] sm:$0xff] 0.0
        $region56: #{tpu_custom_call.1} parent=43 // pred_fallthru
          _
        %v415 = vld [vmem:[#allocation2] sm:$0xff]
        %v416 = vld [vmem:[#allocation2 + $0x8] sm:$0xff]
        %v417 = vld [vmem:[%s332] sm:$0xff]
        %v418 = vld [vmem:[%s332 + $0x8] sm:$0xff]
        %v419 = vld [vmem:[%s341] sm:$0xff]
        %v420 = vld [vmem:[%s341 + $0x8] sm:$0xff]
        %v421 = vld [vmem:[%s341 + $0x10] sm:$0xff]
        %v422 = vld [vmem:[%s341 + $0x18] sm:$0xff]
        %v423 = vld [vmem:[%s341 + $0x20] sm:$0xff]
        %v424 = vld [vmem:[%s341 + $0x28] sm:$0xff]
        %v425 = vld [vmem:[%s341 + $0x30] sm:$0xff]
        %v426 = vld [vmem:[%s341 + $0x38] sm:$0xff]
        %v427 = vld [vmem:[%s341 + $0x40] sm:$0xff]
        %v428 = vld [vmem:[%s341 + $0x48] sm:$0xff]
        %v429 = vld [vmem:[%s341 + $0x50] sm:$0xff]
        %v430 = vld [vmem:[%s341 + $0x58] sm:$0xff]
        %v431 = vld [vmem:[%s341 + $0x60] sm:$0xff]
        %v432 = vld [vmem:[%s341 + $0x68] sm:$0xff]
        %v433 = vld [vmem:[%s341 + $0x70] sm:$0xff]
        %v434 = vld [vmem:[%s341 + $0x78] sm:$0xff]
        %435 = vmatprep.subr.mxu0 0.0
        %436 = vmatpush1.msra.mxu0 %v419
        %437 = vmatprep.subr.mxu0 0.0
        %438 = vmatpush1.msra.mxu0 %v420
        %439 = vmatprep.subr.mxu0 0.0
        %440 = vmatpush1.msra.mxu0 %v421
        %441 = vmatprep.subr.mxu0 0.0
        %442 = vmatpush1.msra.mxu0 %v422
        %443 = vmatprep.subr.mxu0 0.0
        %444 = vmatpush1.msra.mxu0 %v423
        %445 = vmatprep.subr.mxu0 0.0
        %446 = vmatpush1.msra.mxu0 %v424
        %447 = vmatprep.subr.mxu0 0.0
        %448 = vmatpush1.msra.mxu0 %v425
        %449 = vmatprep.subr.mxu0 0.0
        %450 = vmatpush1.msra.mxu0 %v426
        %451 = vmatprep.subr.mxu0 0.0
        %452 = vmatpush1.msra.mxu0 %v427
        %453 = vmatprep.subr.mxu0 0.0
        %454 = vmatpush1.msra.mxu0 %v428
        %455 = vmatprep.subr.mxu0 0.0
        %456 = vmatpush1.msra.mxu0 %v429
        %457 = vmatprep.subr.mxu0 0.0
        %458 = vmatpush1.msra.mxu0 %v430
        %459 = vmatprep.subr.mxu0 0.0
        %460 = vmatpush1.msra.mxu0 %v431
        %461 = vmatprep.subr.mxu0 0.0
        %462 = vmatpush1.msra.mxu0 %v432
        %463 = vmatprep.subr.mxu0 0.0
        %464 = vmatpush1.msra.mxu0 %v433
        %465 = vmatprep.subr.mxu0 0.0
        %466 = vmatpush1.msra.mxu0 %v434
        %467 = vmatprep.subr.mxu0 0.0
        %468 = vmatpush1.msra.mxu0 0.0
        %469 = vmatprep.subr.mxu0 0.0
        %470 = vmatpush1.msra.mxu0 0.0
        %471 = vmatprep.subr.mxu0 0.0
        %472 = vmatpush1.msra.mxu0 0.0
        %473 = vmatprep.subr.mxu0 0.0
        %474 = vmatpush1.msra.mxu0 0.0
        %475 = vmatprep.subr.mxu0 0.0
        %476 = vmatpush1.msra.mxu0 0.0
        %477 = vmatprep.subr.mxu0 0.0
        %478 = vmatpush1.msra.mxu0 0.0
        %479 = vmatprep.subr.mxu0 0.0
        %480 = vmatpush1.msra.mxu0 0.0
        %481 = vmatprep.subr.mxu0 0.0
        %482 = vmatpush1.msra.mxu0 0.0
        %483 = vmatprep.subr.mxu0 0.0
        %484 = vmatpush1.msra.mxu0 0.0
        %485 = vmatprep.subr.mxu0 0.0
        %486 = vmatpush1.msra.mxu0 0.0
        %487 = vmatprep.subr.mxu0 0.0
        %488 = vmatpush1.msra.mxu0 0.0
        %489 = vmatprep.subr.mxu0 0.0
        %490 = vmatpush1.msra.mxu0 0.0
        %491 = vmatprep.subr.mxu0 0.0
        %492 = vmatpush1.msra.mxu0 0.0
        %493 = vmatprep.subr.mxu0 0.0
        %494 = vmatpush1.msra.mxu0 0.0
        %495 = vmatprep.subr.mxu0 0.0
        %496 = vmatpush1.msra.mxu0 0.0
        %497 = vmatprep.subr.mxu0 0.0
        %498 = vmatpush1.msra.mxu0 0.0
        %499 = vmatprep.mubr.f32.mxu0 0.0
        %500 = vmatmul.mubr.f32.gmra.mrb[0].mxu0 %v417
        %v501 = vpop.f32.mrb[0].mxu0
        %v502 = vadd.f32 0.0, %v501
        %v503 = vpop.f32.mrb[0].mxu0
        %504 = vmatprep.mubr.f32.mxu0 0.0
        %505 = vmatmul.mubr.f32.gmra.mrb[0].mxu0 %v418
        %v506 = vpop.f32.mrb[0].mxu0
        %v507 = vadd.f32 0.0, %v506
        %v508 = vpop.f32.mrb[0].mxu0
        %509 = vdwg.mxu0
        %v510 = vadd.f32 %v415, %v502
        %v511 = vadd.f32 %v416, %v507
        %512 = vst [vmem:[#allocation2] sm:$0xff] %v510
        %513 = vst [vmem:[#allocation2 + $0x8] sm:$0xff] %v511
        %p514 = scmp.eq.s32.totalorder %s33, 1
        // Predicated region
        $region57: #{tpu_custom_call.1} parent=43 // pred_check
          %p515 = pneg %p514
        $region58: #{tpu_custom_call.1} parent=43 // pred_check_branch
          %517 = sbr.rel (%p515) target = $region60
        $region59: #{tpu_custom_call.1} parent=43 // pred_region
          %v518 = vld [vmem:[%s399] sm:$0xff]
          %v519 = vld [vmem:[%s399 + $0x8] sm:$0xff]
          %v520 = vld [vmem:[%s404] sm:$0xff]
          %vm521 = vcmask 64512
          %v523 = vsel %vm521, %v518, 0
          %v526 = vsel %vm521, %v519, 0
          %528 = vmatprep.subr.mxu0 0.0
          %529 = vmatpush1.msra.mxu0 %v520
          %530 = vmatprep.subr.mxu0 0.0
          %531 = vmatpush1.msra.mxu0 0.0
          %532 = vmatprep.subr.mxu0 0.0
          %533 = vmatpush1.msra.mxu0 0.0
          %534 = vmatprep.subr.mxu0 0.0
          %535 = vmatpush1.msra.mxu0 0.0
          %536 = vmatprep.subr.mxu0 0.0
          %537 = vmatpush1.msra.mxu0 0.0
          %538 = vmatprep.subr.mxu0 0.0
          %539 = vmatpush1.msra.mxu0 0.0
          %540 = vmatprep.subr.mxu0 0.0
          %541 = vmatpush1.msra.mxu0 0.0
          %542 = vmatprep.subr.mxu0 0.0
          %543 = vmatpush1.msra.mxu0 0.0
          %544 = vmatprep.subr.mxu0 0.0
          %545 = vmatpush1.msra.mxu0 0.0
          %546 = vmatprep.subr.mxu0 0.0
          %547 = vmatpush1.msra.mxu0 0.0
          %548 = vmatprep.subr.mxu0 0.0
          %549 = vmatpush1.msra.mxu0 0.0
          %550 = vmatprep.subr.mxu0 0.0
          %551 = vmatpush1.msra.mxu0 0.0
          %552 = vmatprep.subr.mxu0 0.0
          %553 = vmatpush1.msra.mxu0 0.0
          %554 = vmatprep.subr.mxu0 0.0
          %555 = vmatpush1.msra.mxu0 0.0
          %556 = vmatprep.subr.mxu0 0.0
          %557 = vmatpush1.msra.mxu0 0.0
          %558 = vmatprep.subr.mxu0 0.0
          %559 = vmatpush1.msra.mxu0 0.0
          %560 = vmatprep.subr.mxu0 0.0
          %561 = vmatpush1.msra.mxu0 0.0
          %562 = vmatprep.subr.mxu0 0.0
          %563 = vmatpush1.msra.mxu0 0.0
          %564 = vmatprep.subr.mxu0 0.0
          %565 = vmatpush1.msra.mxu0 0.0
          %566 = vmatprep.subr.mxu0 0.0
          %567 = vmatpush1.msra.mxu0 0.0
          %568 = vmatprep.subr.mxu0 0.0
          %569 = vmatpush1.msra.mxu0 0.0
          %570 = vmatprep.subr.mxu0 0.0
          %571 = vmatpush1.msra.mxu0 0.0
          %572 = vmatprep.subr.mxu0 0.0
          %573 = vmatpush1.msra.mxu0 0.0
          %574 = vmatprep.subr.mxu0 0.0
          %575 = vmatpush1.msra.mxu0 0.0
          %576 = vmatprep.subr.mxu0 0.0
          %577 = vmatpush1.msra.mxu0 0.0
          %578 = vmatprep.subr.mxu0 0.0
          %579 = vmatpush1.msra.mxu0 0.0
          %580 = vmatprep.subr.mxu0 0.0
          %581 = vmatpush1.msra.mxu0 0.0
          %582 = vmatprep.subr.mxu0 0.0
          %583 = vmatpush1.msra.mxu0 0.0
          %584 = vmatprep.subr.mxu0 0.0
          %585 = vmatpush1.msra.mxu0 0.0
          %586 = vmatprep.subr.mxu0 0.0
          %587 = vmatpush1.msra.mxu0 0.0
          %588 = vmatprep.subr.mxu0 0.0
          %589 = vmatpush1.msra.mxu0 0.0
          %590 = vmatprep.subr.mxu0 0.0
          %591 = vmatpush1.msra.mxu0 0.0
          %592 = vmatprep.mubr.f32.mxu0 0.0
          %593 = vmatmul.mubr.f32.gmra.mrb[0].mxu0 %v523
          %v594 = vpop.f32.mrb[0].mxu0
          %v595 = vadd.f32 0.0, %v594
          %v596 = vpop.f32.mrb[0].mxu0
          %597 = vmatprep.mubr.f32.mxu0 0.0
          %598 = vmatmul.mubr.f32.gmra.mrb[0].mxu0 %v526
          %v599 = vpop.f32.mrb[0].mxu0
          %v600 = vadd.f32 0.0, %v599
          %v601 = vpop.f32.mrb[0].mxu0
          %602 = vdwg.mxu0
          %v603 = vld [vmem:[#allocation2] sm:$0xff]
          %v604 = vld [vmem:[#allocation2 + $0x8] sm:$0xff]
          %v605 = vld [vmem:[%s394] sm:$0x1]
          %v607 = vlaneseq
          %v608 = vshrl.u32 %v607, 7
          %v609 = vsub.s32 0, %v608
          %v610 = vrot.slane %v605, %v609
          %v612 = vadd.f32 %v603, %v610
          %v613 = vadd.f32 %v604, %v610
          %v614 = vld [vmem:[%s407] sm:$0x1]
          %v616 = vlaneseq
          %v617 = vshrl.u32 %v616, 7
          %v618 = vsub.s32 0, %v617
          %v619 = vrot.slane %v614, %v618
          %v621 = vmul.f32 %v619, %v595
          %v622 = vmul.f32 %v619, %v600
          %v623 = vadd.f32 %v612, %v621
          %v624 = vadd.f32 %v613, %v622
          %625 = vst [vmem:[%s389] sm:$0xff] %v623
          %626 = vst [vmem:[%s389 + $0x8] sm:$0xff] %v624
        $region60: #{tpu_custom_call.1} parent=43 // pred_fallthru
          _
        %s627 = sand.u32 %s215, 1
        %s628 = scalar_lea.sflag [#allocation5], %s627
        %s629 = sand.u32 %s215, 1
        %s630 = smul.addr %s629, 16
        %s631 = scalar_lea.vmem [#allocation8], %s630
        // Predicated region
        $region61: #{tpu_custom_call.1} parent=43 // pred_check
          %p632 = pneg %p225
        $region62: #{tpu_custom_call.1} parent=43 // pred_check_branch
          %634 = sbr.rel (%p632) target = $region64
        $region63: #{tpu_custom_call.1} parent=43 // pred_region
          %s635 = smul.u32 2, %s31
          %s637 = ssub.s32 256, 256
          %638 = vsyncadd %s628, %s637
          %s639 = smul.addr %s635, 3
          %s640 = sadd.s32 %s32, %s639
          %s641 = smul.addr %s640, 128
          %s642 = scalar_lea.hbm %s6, %s641
          %s643 = sshll.u32 %s631, 4
          %s644 = int_to_ptr.vmem [resolvable:$true] %s643
          %649 = dma.vmem_to_hbm [thread:$0]  %s644, 256, %s642, %s628, 128, 384, 8
        $region64: #{tpu_custom_call.1} parent=43 // pred_fallthru
          _
      $region44: #{tpu_custom_call.1} parent=5 // pred_fallthru
        _
      %p650 = scmp.le.s32.totalorder 2, %s21
      // Predicated region
      $region65: #{tpu_custom_call.1} parent=5 // pred_check
        %p651 = pneg %p650
      $region66: #{tpu_custom_call.1} parent=5 // pred_check_branch
        %653 = sbr.rel (%p651) target = $region68
      $region67: #{tpu_custom_call.1} parent=5 // pred_region
        %s654 = ssub.s32 %s21, 2
        // Predicated region
        $region69: #{tpu_custom_call.1} parent=67 // pred_check
          %p655 = pneg %p231
        $region70: #{tpu_custom_call.1} parent=67 // pred_check_branch
          %657 = sbr.rel (%p655) target = $region72
        $region71: #{tpu_custom_call.1} parent=67 // pred_region
          %s658 = sand.u32 %s216, 1
          %s659 = scalar_lea.sflag [#allocation5], %s658
          %s660 = sand.u32 %s216, 1
          %s661 = smul.addr %s660, 16
          %s662 = scalar_lea.vmem [#allocation8], %s661
          %663 = dma.done %s659, 256
        $region72: #{tpu_custom_call.1} parent=67 // pred_fallthru
          _
      $region68: #{tpu_custom_call.1} parent=5 // pred_fallthru
        _
    $region6: #{tpu_custom_call.1} parent=1 // loop_footer
      %s25 = sadd.s32 1, %s21
    $region7: #{tpu_custom_call.1} parent=1 // loop_footer_branch
      %20 = sbr.rel target = $region3
    $region8: #{tpu_custom_call.1} parent=1 // loop_exit
      _
    %664 = vsyncpa [#allocation4], 1
    %s665 = scalar_lea.sflag [#allocation4], 1
    %666 = vsyncpa %s665, 1
    %667 = vsyncpa [#allocation7], 1
    %s668 = scalar_lea.sflag [#allocation7], 1
    %669 = vsyncpa %s668, 1
    %670 = vsyncpa [#allocation5], 1
    %s671 = scalar_lea.sflag [#allocation5], 1
    %672 = vsyncpa %s671, 1

</llo_original>
